<compile_context>
chip_gen: v6e
topology: v6e:2x2x1
jax: 0.10.0
libtpu: 0.0.40
codegen_flags: <defaults>
</compile_context>

<pallas_src>
import functools

import jax
import jax.numpy as jnp
from jax.experimental import pallas as pl
from jax.experimental.pallas import tpu as pltpu


def _cdan_kernel(h_ref, w1_ref, b1_ref, w2_ref, b2_ref, out_ref, acc_ref, *, b_s):
    # h_ref   : (B, tk)   K tile of the MultiLinearMap LHS (bf16)
    # w1_ref  : (tk, H)   K tile of the first Linear layer (bf16, double-buffered)
    # b1_ref  : (1, H)    first-layer bias (f32)
    # w2_ref  : (1, H)    second-layer weight row (f32)
    # b2_ref  : (1, 1)    second-layer bias (SMEM scalar, f32)
    # out_ref : (1, 128)  BCE sum, broadcast across lanes (lane-dense store)
    # acc_ref : (B, H)    f32 accumulator scratch for z1
    k = pl.program_id(0)
    nk = pl.num_programs(0)

    @pl.when(k == 0)
    def _init():
        acc_ref[...] = jnp.zeros_like(acc_ref)

    # One MXU matmul per K tile; f32 accumulation.  W1 is read from HBM exactly
    # once over the whole grid.
    acc_ref[...] += jnp.dot(h_ref[...], w1_ref[...],
                            preferred_element_type=jnp.float32)

    @pl.when(k == nk - 1)
    def _finalize():
        z1 = acc_ref[...] + b1_ref[...]                                        # (B, H) f32
        a1 = jnp.maximum(z1, 0.0)
        # Second Linear (H -> 1): lane-wise multiply + cross-lane reduce
        # (VPU/XLU), keeping the MXU out of the epilogue.
        z2 = jnp.sum(a1 * w2_ref[...], axis=-1, keepdims=True) + b2_ref[0, 0]  # (B, 1)
        # Domain labels synthesized from the row index: rows [0, B_s) are source
        # (label 1), the rest target (label 0).
        rows = jax.lax.broadcasted_iota(jnp.int32, z2.shape, 0)
        label = (rows < b_s).astype(jnp.float32)
        # Numerically stable BCE-with-logits (== BCE(sigmoid(z2), label)).
        bce = jnp.maximum(z2, 0.0) - label * z2 + jnp.log1p(jnp.exp(-jnp.abs(z2)))
        out_ref[...] = jnp.broadcast_to(jnp.sum(bce), out_ref.shape)


def cdan_loss(g_s, f_s, g_t, f_t, w1, b1, w2, b2, *,
              tile_k=None, tile_bytes=4 * 1024 * 1024, mxu_dtype=jnp.bfloat16):
    """ConditionalDomainAdversarialLoss.forward (default config) -> scalar loss."""
    B_s, C = g_s.shape
    B_t, C_t = g_t.shape
    Fdim = f_s.shape[1]
    H = w1.shape[1]
    assert C_t == C and f_t.shape[1] == Fdim and w1.shape[0] == C * Fdim
    Btot = B_s + B_t
    K = C * Fdim
    f32 = jnp.float32
    w_item = jnp.dtype(mxu_dtype).itemsize

    # K tile sized by bytes (~tile_bytes of W1 per tile), as a multiple of 256
    # (fills the MXU contraction dim on v6e/v7x, and 128-aligned for v5e).  K is
    # zero-padded up to a multiple of the tile; zero LHS columns / W1 rows do not
    # change the matmul result.
    if tile_k is None:
        tk = max(256, (tile_bytes // (H * w_item)) // 256 * 256)
    else:
        tk = int(tile_k)
    assert tk % 256 == 0, "K tile must be a multiple of 256"
    k_min = pl.cdiv(K, 256) * 256
    tk = min(tk, k_min)
    Kpad = pl.cdiv(K, tk) * tk
    nk = Kpad // tk

    # Precompute the MultiLinearMap LHS once in the wrapper (tiny (B, C*F) op):
    #   h[:, c*F + j] = softmax(g)[:, c] * f[:, j]
    g = jnp.concatenate([g_s, g_t], axis=0).astype(f32)
    f = jnp.concatenate([f_s, f_t], axis=0).astype(f32)
    p = jax.nn.softmax(g, axis=1)                                  # (B, C), detached in torch
    h = (p[:, :, None] * f[:, None, :]).reshape(Btot, K)
    if Kpad != K:
        h = jnp.pad(h, ((0, 0), (0, Kpad - K)))
    h_m = h.astype(mxu_dtype)

    w1_m = w1.astype(mxu_dtype)                                    # dominant operand, streamed once
    if Kpad != K:
        w1_m = jnp.pad(w1_m, ((0, Kpad - K), (0, 0)))
    b1_r = b1.reshape(1, H).astype(f32)
    w2_r = w2.reshape(1, H).astype(f32)
    b2_s = b2.reshape(1, 1).astype(f32)

    kernel = functools.partial(_cdan_kernel, b_s=B_s)

    cost = pl.CostEstimate(
        flops=2 * Btot * Kpad * H + 2 * Btot * H,
        transcendentals=2 * Btot,
        bytes_accessed=Kpad * H * w_item            # W1 streamed exactly once
        + Btot * Kpad * w_item                      # h streamed once
        + 2 * H * 4 + 128 * 4,
    )

    out = pl.pallas_call(
        kernel,
        out_shape=jax.ShapeDtypeStruct((1, 128), f32),
        grid_spec=pltpu.PrefetchScalarGridSpec(
            num_scalar_prefetch=0,
            grid=(nk,),                                            # K tiles only
            in_specs=[
                pl.BlockSpec((Btot, tk), lambda k: (0, k)),        # h K tile
                pl.BlockSpec((tk, H), lambda k: (k, 0)),           # W1 K tile (double-buffered)
                pl.BlockSpec((1, H), lambda k: (0, 0)),            # b1 (constant block)
                pl.BlockSpec((1, H), lambda k: (0, 0)),            # w2 row (constant block)
                pl.BlockSpec(memory_space=pltpu.MemorySpace.SMEM), # b2 scalar
            ],
            out_specs=pl.BlockSpec((1, 128), lambda k: (0, 0)),    # lane-dense BCE sum
            scratch_shapes=[pltpu.VMEM((Btot, H), f32)],           # z1 accumulator
        ),
        compiler_params=pltpu.CompilerParams(
            dimension_semantics=("arbitrary",),                    # K is a reduction axis
            vmem_limit_bytes=48 * 1024 * 1024,                     # safe on v7x (64 MiB) and v5e/v6e
        ),
        cost_estimate=cost,
    )(h_m, w1_m, b1_r, w2_r, b2_s)

    # reduction='mean' over the true total batch size.
    return out[0, 0] / jnp.float32(Btot)


def _reference_loss(g_s, f_s, g_t, f_t, w1, b1, w2, b2, *, mxu_dtype=jnp.float32):
    """Pure-JAX reference mirroring the PyTorch forward (optionally bf16 MXU rounding)."""
    f = jnp.concatenate([f_s, f_t], axis=0).astype(jnp.float32)
    g = jax.nn.softmax(jnp.concatenate([g_s, g_t], axis=0).astype(jnp.float32), axis=1)
    B = f.shape[0]
    h = (g[:, :, None] * f[:, None, :]).reshape(B, -1)             # MultiLinearMap
    z1 = (h.astype(mxu_dtype).astype(jnp.float32)
          @ w1.astype(mxu_dtype).astype(jnp.float32)) + b1
    a1 = jnp.maximum(z1, 0.0)
    d = jax.nn.sigmoid(a1 @ w2 + b2)
    y = jnp.concatenate([jnp.ones((g_s.shape[0], 1)), jnp.zeros((g_t.shape[0], 1))], axis=0)
    bce = -(y * jnp.log(d) + (1.0 - y) * jnp.log(1.0 - d))
    return jnp.mean(bce)


def _run_case(key, B_s, B_t, C, Fdim, H, tile_k):
    kgs, kfs, kgt, kft, kw1, kb1, kw2, kb2 = jax.random.split(key, 8)
    g_s = jax.random.normal(kgs, (B_s, C), jnp.float32)
    f_s = jax.random.normal(kfs, (B_s, Fdim), jnp.float32)
    g_t = jax.random.normal(kgt, (B_t, C), jnp.float32)
    f_t = jax.random.normal(kft, (B_t, Fdim), jnp.float32)
    # Discriminator params: Linear(C*F, H) -> ReLU -> Linear(H, 1) -> Sigmoid.
    w1 = jax.random.normal(kw1, (C * Fdim, H), jnp.float32) * 0.05
    b1 = jax.random.normal(kb1, (H,), jnp.float32) * 0.01
    w2 = jax.random.normal(kw2, (H, 1), jnp.float32) * 0.05
    b2 = jax.random.normal(kb2, (1,), jnp.float32) * 0.01

    loss = jax.jit(functools.partial(cdan_loss, tile_k=tile_k))(
        g_s, f_s, g_t, f_t, w1, b1, w2, b2)
    jax.block_until_ready(loss)

    ref_bf16 = _reference_loss(g_s, f_s, g_t, f_t, w1, b1, w2, b2, mxu_dtype=jnp.bfloat16)
    ref_f32 = _reference_loss(g_s, f_s, g_t, f_t, w1, b1, w2, b2, mxu_dtype=jnp.float32)
    assert jnp.allclose(loss, ref_bf16, rtol=2e-3, atol=2e-3), (loss, ref_bf16)
    assert jnp.allclose(loss, ref_f32, rtol=5e-2, atol=5e-2), (loss, ref_f32)


if __name__ == "__main__":
    key = jax.random.PRNGKey(0)
    k1, k2 = jax.random.split(key)
    # Case 1: B_s = B_t = 8, C = 8, F = 128, H = 256 -> W1 (1024, 256); tile_k=512
    # forces 2 K tiles so the accumulate-across-K path is exercised.
    _run_case(k1, B_s=8, B_t=8, C=8, Fdim=128, H=256, tile_k=512)
    # Case 2: unequal batches and odd class count (K = 7*128 = 896 zero-padded to 1024).
    _run_case(k2, B_s=6, B_t=10, C=7, Fdim=128, H=256, tile_k=512)
    print("KERNEL_OK")
</pallas_src>

<mosaic_0001>
module attributes {stable_mosaic.version = 11 : i64} {
  func.func @_cdan_kernel(%arg0: i32, %arg1: memref<16x512xbf16, #tpu.memory_space<vmem>>, %arg2: memref<512x256xbf16, #tpu.memory_space<vmem>>, %arg3: memref<1x256xf32, #tpu.memory_space<vmem>>, %arg4: memref<1x256xf32, #tpu.memory_space<vmem>>, %arg5: memref<1x1xf32, #tpu.memory_space<smem>>, %arg6: memref<1x128xf32, #tpu.memory_space<vmem>>, %arg7: memref<16x256xf32, #tpu.memory_space<vmem>>) attributes {dimension_semantics = [#tpu.dimension_semantics<arbitrary>], iteration_bounds = array<i64: 2>, scalar_prefetch = 0 : i64, scratch_operands = 1 : i64, tpu.core_type = #tpu.core_type<tc>, window_params = [{transform_indices = @transform_0, window_bounds = array<i64: 16, 512>}, {transform_indices = @transform_1, window_bounds = array<i64: 512, 256>}, {pipeline_mode = #tpu.pipeline_mode<synchronous>, transform_indices = @transform_2, window_bounds = array<i64: 1, 256>}, {pipeline_mode = #tpu.pipeline_mode<synchronous>, transform_indices = @transform_3, window_bounds = array<i64: 1, 256>}, {transform_indices = @transform_4, window_bounds = array<i64: 1, 1>}, {pipeline_mode = #tpu.pipeline_mode<synchronous>, transform_indices = @transform_5, window_bounds = array<i64: 1, 128>}]} {
    %c0_i32 = arith.constant 0 : i32
    %0 = arith.cmpi eq, %arg0, %c0_i32 : i32
    %1 = arith.extui %0 : i1 to i32
    %c0_i32_0 = arith.constant 0 : i32
    %2 = arith.cmpi ne, %1, %c0_i32_0 : i32
    scf.if %2 {
      %cst_9 = arith.constant 0.000000e+00 : f32
      %12 = vector.broadcast %cst_9 : f32 to vector<16x256xf32>
      %c0_10 = arith.constant 0 : index
      %c0_11 = arith.constant 0 : index
      %13 = vector.load %arg7[%c0_10, %c0_11] : memref<16x256xf32, #tpu.memory_space<vmem>>, vector<16x256xf32>
      tpu.vector_store %arg7[%c0_10, %c0_11], %12 {strides = array<i32>} : memref<16x256xf32, #tpu.memory_space<vmem>>, vector<16x256xf32>,
    } else {
    }
    %c0 = arith.constant 0 : index
    %c0_1 = arith.constant 0 : index
    %3 = vector.load %arg7[%c0, %c0_1] : memref<16x256xf32, #tpu.memory_space<vmem>>, vector<16x256xf32>
    %c0_2 = arith.constant 0 : index
    %c0_3 = arith.constant 0 : index
    %4 = vector.load %arg1[%c0_2, %c0_3] : memref<16x512xbf16, #tpu.memory_space<vmem>>, vector<16x512xbf16>
    %c0_4 = arith.constant 0 : index
    %c0_5 = arith.constant 0 : index
    %5 = vector.load %arg2[%c0_4, %c0_5] : memref<512x256xbf16, #tpu.memory_space<vmem>>, vector<512x256xbf16>
    %cst = arith.constant dense<0.000000e+00> : vector<16x256xf32>
    %6 = tpu.matmul %4, %5, %cst {dimension_numbers = #tpu.dot_dimension_numbers<[1], [0], [0], [1], [0, 0, 1, 1], [], []>} : vector<16x512xbf16>, vector<512x256xbf16>, vector<16x256xf32> -> vector<16x256xf32>
    %7 = arith.addf %3, %6 : vector<16x256xf32>
    %c0_6 = arith.constant 0 : index
    %c0_7 = arith.constant 0 : index
    %8 = vector.load %arg7[%c0_6, %c0_7] : memref<16x256xf32, #tpu.memory_space<vmem>>, vector<16x256xf32>
    tpu.vector_store %arg7[%c0_6, %c0_7], %7 {strides = array<i32>} : memref<16x256xf32, #tpu.memory_space<vmem>>, vector<16x256xf32>,
    %c1_i32 = arith.constant 1 : i32
    %9 = arith.cmpi eq, %arg0, %c1_i32 : i32
    %10 = arith.extui %9 : i1 to i32
    %c0_i32_8 = arith.constant 0 : i32
    %11 = arith.cmpi ne, %10, %c0_i32_8 : i32
    scf.if %11 {
      %c0_9 = arith.constant 0 : index
      %c0_10 = arith.constant 0 : index
      %12 = vector.load %arg7[%c0_9, %c0_10] : memref<16x256xf32, #tpu.memory_space<vmem>>, vector<16x256xf32>
      %c0_11 = arith.constant 0 : index
      %c0_12 = arith.constant 0 : index
      %13 = vector.load %arg3[%c0_11, %c0_12] : memref<1x256xf32, #tpu.memory_space<vmem>>, vector<1x256xf32>
      %14 = vector.broadcast %13 : vector<1x256xf32> to vector<16x256xf32>
      %15 = arith.addf %12, %14 : vector<16x256xf32>
      %cst_13 = arith.constant 0.000000e+00 : f32
      %16 = vector.broadcast %cst_13 : f32 to vector<16x256xf32>
      %17 = arith.maximumf %15, %16 : vector<16x256xf32>
      %c0_14 = arith.constant 0 : index
      %c0_15 = arith.constant 0 : index
      %18 = vector.load %arg4[%c0_14, %c0_15] : memref<1x256xf32, #tpu.memory_space<vmem>>, vector<1x256xf32>
      %19 = vector.broadcast %18 : vector<1x256xf32> to vector<16x256xf32>
      %20 = arith.mulf %17, %19 : vector<16x256xf32>
      %cst_16 = arith.constant dense<0.000000e+00> : vector<16xf32>
      %21 = vector.multi_reduction <add>, %20, %cst_16 [1] : vector<16x256xf32> to vector<16xf32>
      %22 = vector.shape_cast %21 : vector<16xf32> to vector<16x1xf32>
      %c0_17 = arith.constant 0 : index
      %c0_18 = arith.constant 0 : index
      %23 = memref.load %arg5[%c0_17, %c0_18] : memref<1x1xf32, #tpu.memory_space<smem>>
      %24 = vector.broadcast %23 : f32 to vector<16x1xf32>
      %25 = arith.addf %22, %24 : vector<16x1xf32>
      %26 = tpu.iota {dimensions = array<i32: 0>} : vector<16x1xi32>
      %c8_i32 = arith.constant 8 : i32
      %27 = vector.broadcast %c8_i32 : i32 to vector<16x1xi32>
      %28 = arith.cmpi slt, %26, %27 : vector<16x1xi32>
      %29 = arith.extui %28 : vector<16x1xi1> to vector<16x1xi32>
      %30 = arith.sitofp %29 : vector<16x1xi32> to vector<16x1xf32>
      %cst_19 = arith.constant 0.000000e+00 : f32
      %31 = vector.broadcast %cst_19 : f32 to vector<16x1xf32>
      %32 = arith.maximumf %25, %31 : vector<16x1xf32>
      %33 = arith.mulf %30, %25 : vector<16x1xf32>
      %34 = arith.subf %32, %33 : vector<16x1xf32>
      %35 = math.absf %25 : vector<16x1xf32>
      %cst_20 = arith.constant 0.000000e+00 : f32
      %36 = vector.broadcast %cst_20 : f32 to vector<16x1xf32>
      %37 = arith.subf %36, %35 : vector<16x1xf32>
      %38 = math.exp %37 : vector<16x1xf32>
      %39 = math.log1p %38 : vector<16x1xf32>
      %40 = arith.addf %34, %39 : vector<16x1xf32>
      %41 = vector.shape_cast %40 : vector<16x1xf32> to vector<1x16x1xf32>
      %cst_21 = arith.constant dense<0.000000e+00> : vector<1xf32>
      %42 = vector.multi_reduction <add>, %41, %cst_21 [1, 2] : vector<1x16x1xf32> to vector<1xf32>
      %43 = vector.shape_cast %42 : vector<1xf32> to vector<1x1x1xf32>
      %44 = vector.extract %43[0, 0, 0] : f32 from vector<1x1x1xf32>
      %45 = vector.broadcast %44 : f32 to vector<1x128xf32>
      %c0_22 = arith.constant 0 : index
      %c0_23 = arith.constant 0 : index
      %46 = vector.load %arg6[%c0_22, %c0_23] : memref<1x128xf32, #tpu.memory_space<vmem>>, vector<1x128xf32>
      tpu.vector_store %arg6[%c0_22, %c0_23], %45 {strides = array<i32>} : memref<1x128xf32, #tpu.memory_space<vmem>>, vector<1x128xf32>,
    } else {
    }
    return
  }
  func.func @transform_0(%arg0: i32) -> (i32, i32) {
    %c0_i32 = arith.constant 0 : i32
    %c0_i32_0 = arith.constant 0 : i32
    return %c0_i32, %arg0 : i32, i32
  }
  func.func @transform_1(%arg0: i32) -> (i32, i32) {
    %c0_i32 = arith.constant 0 : i32
    %c0_i32_0 = arith.constant 0 : i32
    return %arg0, %c0_i32 : i32, i32
  }
  func.func @transform_2(%arg0: i32) -> (i32, i32) {
    %c0_i32 = arith.constant 0 : i32
    %c0_i32_0 = arith.constant 0 : i32
    %c0_i32_1 = arith.constant 0 : i32
    return %c0_i32, %c0_i32_0 : i32, i32
  }
  func.func @transform_3(%arg0: i32) -> (i32, i32) {
    %c0_i32 = arith.constant 0 : i32
    %c0_i32_0 = arith.constant 0 : i32
    %c0_i32_1 = arith.constant 0 : i32
    return %c0_i32, %c0_i32_0 : i32, i32
  }
  func.func @transform_4(%arg0: i32) -> (i32, i32) {
    %c0_i32 = arith.constant 0 : i32
    %c0_i32_0 = arith.constant 0 : i32
    %c0_i32_1 = arith.constant 0 : i32
    return %c0_i32, %c0_i32_0 : i32, i32
  }
  func.func @transform_5(%arg0: i32) -> (i32, i32) {
    %c0_i32 = arith.constant 0 : i32
    %c0_i32_0 = arith.constant 0 : i32
    %c0_i32_1 = arith.constant 0 : i32
    return %c0_i32, %c0_i32_0 : i32, i32
  }
}

</mosaic_0001>

<llo_original>
// kernel: cdan_loss.1
$region0: #{cdan_loss.1}
  #allocation0 [shape = 'u32[]', space=smem, size = 0x4, offset = 0x4, fixed_abs, tag = 'smem constant byte address 0x4 - core index']
  #allocation1 [shape = 'u32[144,128]{1,0:T(1,128)}', space=vmem, size = 0x12000, scoped, tag = 'internal scratch']
  #allocation2 [shape = 'f32[16,256]{1,0:T(8,128)}', space=vmem, size = 0x4000, scoped, tag = 'scratch operand']
  #allocation3 [shape = 'f32[1,1]{1,0:T(1,128)S(6)}', space=smem, size = 0x200, scoped, tag = 'scoped memory for cdan_loss.1']
  %s0 = inlined_call_operand.vmem [shape: bf16[16,1024], index: 0, kind: input, shape index: {}]
  %s1 = inlined_call_operand.vmem [shape: bf16[1024,256], index: 1, kind: input, shape index: {}]
  %s2 = inlined_call_operand.vmem [shape: f32[1,256], index: 2, kind: input, shape index: {}]
  %s3 = inlined_call_operand.vmem [shape: f32[1,256], index: 3, kind: input, shape index: {}]
  %s4 = inlined_call_operand.<no memory space> [shape: f32[1,1], index: 4, kind: input, shape index: {}]
  %s5 = inlined_call_operand.vmem [shape: f32[1,128], index: 5, kind: output, shape index: {}]
  %s6 = sld [smem:[#allocation0]]
  $region84: #{cdan_loss.1} parent=0
    _
  %s8 = ssub.s32 1, %s6
  %s9 = scalar_select 0, %s8, %s6
  %10 = sst [smem:[#allocation3]] %s4
  $region1: #{cdan_loss.1} parent=0
    #allocation4 [shape = 'u8[32768]{0}', space=vmem, size = 0x8000, scoped, tag = 'input window, operand 0']
    loop: start=0, step=1, limit=4
    $region2: #{cdan_loss.1} parent=1 // loop_pre_header
      _
    $region3: #{cdan_loss.1} parent=1 // loop_header
      %s12 = sphi 0, %s16
      %p13 = scmp.ge.s32.totalorder %s12, 4
      %s22 = sphi 0, %s24
      %s25 = sphi 0, %s22
      %s26 = sphi 0, %s25
      %s42 = sphi 0, %s26
      %s48 = sphi 0, %s50
      %s51 = sphi 0, %s48
      %s52 = sphi 0, %s51
      %s68 = sphi 0, %s52
      %s72 = sphi 0, %s72
      %s74 = sphi 0, %s72
      %s75 = sphi 0, %s74
      %s89 = sphi 0, %s75
      %s93 = sphi 0, %s93
      %s95 = sphi 0, %s93
      %s96 = sphi 0, %s95
      %s110 = sphi 0, %s96
      %s114 = sphi 0, %s114
      %s116 = sphi 0, %s114
      %s117 = sphi 0, %s116
      %s131 = sphi 0, %s117
      %s135 = sphi 0, %s135
      %s137 = sphi 0, %s135
      %s138 = sphi 0, %s137
      %s152 = sphi 0, %s138
    $region4: #{cdan_loss.1} parent=1 // loop_header_branch
      %15 = sbr.rel (%p13) target = $region8
    $region5: #{cdan_loss.1} parent=1 // loop_body
      %s17 = ssub.s32 %s12, 1
      %s18 = ssub.s32 %s12, 2
      %s19 = sadd.s32 %s12, 1
      %s20 = ssub.s32 %s12, %s19
      %p21 = scmp.eq.s32.totalorder %s20, 0
      %s23 = sadd.s32 %s22, 1
      %s24 = scalar_select %p21, %s22, %s23
      %p27 = pneg %p21
      %p28 = scmp.eq.s32.totalorder %s12, 1
      %p29 = por %p27, %p28
      %p30 = scmp.ne.s32.totalorder %s22, %s25
      %p31 = scmp.eq.s32.totalorder %s12, 0
      %p32 = por %p30, %p31
      %p33 = scmp.ne.s32.totalorder %s22, %s25
      %p34 = scmp.eq.s32.totalorder %s17, 1
      %p35 = por %p33, %p34
      %p36 = scmp.ne.s32.totalorder %s25, %s26
      %p37 = scmp.eq.s32.totalorder %s17, 0
      %p38 = por %p36, %p37
      %p39 = scmp.ne.s32.totalorder %s25, %s26
      %p40 = scmp.eq.s32.totalorder %s18, 1
      %p41 = por %p39, %p40
      %p43 = scmp.ne.s32.totalorder %s26, %s42
      %p44 = scmp.eq.s32.totalorder %s18, 0
      %p45 = por %p43, %p44
      %s46 = ssub.s32 %s12, %s19
      %p47 = scmp.eq.s32.totalorder %s46, 0
      %s49 = sadd.s32 %s48, 1
      %s50 = scalar_select %p47, %s48, %s49
      %p53 = pneg %p47
      %p54 = scmp.eq.s32.totalorder %s12, 1
      %p55 = por %p53, %p54
      %p56 = scmp.ne.s32.totalorder %s48, %s51
      %p57 = scmp.eq.s32.totalorder %s12, 0
      %p58 = por %p56, %p57
      %p59 = scmp.ne.s32.totalorder %s48, %s51
      %p60 = scmp.eq.s32.totalorder %s17, 1
      %p61 = por %p59, %p60
      %p62 = scmp.ne.s32.totalorder %s51, %s52
      %p63 = scmp.eq.s32.totalorder %s17, 0
      %p64 = por %p62, %p63
      %p65 = scmp.ne.s32.totalorder %s51, %s52
      %p66 = scmp.eq.s32.totalorder %s18, 1
      %p67 = por %p65, %p66
      %p69 = scmp.ne.s32.totalorder %s52, %s68
      %p70 = scmp.eq.s32.totalorder %s18, 0
      %p71 = por %p69, %p70
      %s73 = sadd.s32 %s72, 1
      %p76 = scmp.eq.s32.totalorder %s12, 1
      %p77 = scmp.ne.s32.totalorder %s72, %s74
      %p78 = scmp.eq.s32.totalorder %s12, 0
      %p79 = por %p77, %p78
      %p80 = scmp.ne.s32.totalorder %s72, %s74
      %p81 = scmp.eq.s32.totalorder %s17, 1
      %p82 = por %p80, %p81
      %p83 = scmp.ne.s32.totalorder %s74, %s75
      %p84 = scmp.eq.s32.totalorder %s17, 0
      %p85 = por %p83, %p84
      %p86 = scmp.ne.s32.totalorder %s74, %s75
      %p87 = scmp.eq.s32.totalorder %s18, 1
      %p88 = por %p86, %p87
      %p90 = scmp.ne.s32.totalorder %s75, %s89
      %p91 = scmp.eq.s32.totalorder %s18, 0
      %p92 = por %p90, %p91
      %s94 = sadd.s32 %s93, 1
      %p97 = scmp.eq.s32.totalorder %s12, 1
      %p98 = scmp.ne.s32.totalorder %s93, %s95
      %p99 = scmp.eq.s32.totalorder %s12, 0
      %p100 = por %p98, %p99
      %p101 = scmp.ne.s32.totalorder %s93, %s95
      %p102 = scmp.eq.s32.totalorder %s17, 1
      %p103 = por %p101, %p102
      %p104 = scmp.ne.s32.totalorder %s95, %s96
      %p105 = scmp.eq.s32.totalorder %s17, 0
      %p106 = por %p104, %p105
      %p107 = scmp.ne.s32.totalorder %s95, %s96
      %p108 = scmp.eq.s32.totalorder %s18, 1
      %p109 = por %p107, %p108
      %p111 = scmp.ne.s32.totalorder %s96, %s110
      %p112 = scmp.eq.s32.totalorder %s18, 0
      %p113 = por %p111, %p112
      %s115 = sadd.s32 %s114, 1
      %p118 = scmp.eq.s32.totalorder %s12, 1
      %p119 = scmp.ne.s32.totalorder %s114, %s116
      %p120 = scmp.eq.s32.totalorder %s12, 0
      %p121 = por %p119, %p120
      %p122 = scmp.ne.s32.totalorder %s114, %s116
      %p123 = scmp.eq.s32.totalorder %s17, 1
      %p124 = por %p122, %p123
      %p125 = scmp.ne.s32.totalorder %s116, %s117
      %p126 = scmp.eq.s32.totalorder %s17, 0
      %p127 = por %p125, %p126
      %p128 = scmp.ne.s32.totalorder %s116, %s117
      %p129 = scmp.eq.s32.totalorder %s18, 1
      %p130 = por %p128, %p129
      %p132 = scmp.ne.s32.totalorder %s117, %s131
      %p133 = scmp.eq.s32.totalorder %s18, 0
      %p134 = por %p132, %p133
      %s136 = sadd.s32 %s135, 1
      %p139 = scmp.eq.s32.totalorder %s12, 1
      %p140 = scmp.ne.s32.totalorder %s135, %s137
      %p141 = scmp.eq.s32.totalorder %s12, 0
      %p142 = por %p140, %p141
      %p143 = scmp.ne.s32.totalorder %s135, %s137
      %p144 = scmp.eq.s32.totalorder %s17, 1
      %p145 = por %p143, %p144
      %p146 = scmp.ne.s32.totalorder %s137, %s138
      %p147 = scmp.eq.s32.totalorder %s17, 0
      %p148 = por %p146, %p147
      %p149 = scmp.ne.s32.totalorder %s137, %s138
      %p150 = scmp.eq.s32.totalorder %s18, 1
      %p151 = por %p149, %p150
      %p153 = scmp.ne.s32.totalorder %s138, %s152
      %p154 = scmp.eq.s32.totalorder %s18, 0
      %p155 = por %p153, %p154
      %p156 = scmp.le.s32.totalorder 1, %s12
      %p157 = scmp.lt.s32.totalorder %s12, 3
      %p158 = pnand %p156, %p157
      %p159 = pneg %p158
      // Predicated region
      $region9: #{cdan_loss.1} parent=5 // pred_check
        _
      $region10: #{cdan_loss.1} parent=5 // pred_check_branch
        %161 = sbr.rel (%p158) target = $region12
      $region11: #{cdan_loss.1} parent=5 // pred_region
        %s162 = ssub.s32 %s12, 1
        // Predicated region
        $region13: #{cdan_loss.1} parent=11 // pred_check
          %p163 = pneg %p85
        $region14: #{cdan_loss.1} parent=11 // pred_check_branch
          %165 = sbr.rel (%p163) target = $region16
        $region15: #{cdan_loss.1} parent=11 // pred_region
          _
        $region16: #{cdan_loss.1} parent=11 // pred_fallthru
          _
        // Predicated region
        $region17: #{cdan_loss.1} parent=11 // pred_check
          %p166 = pneg %p106
        $region18: #{cdan_loss.1} parent=11 // pred_check_branch
          %168 = sbr.rel (%p166) target = $region20
        $region19: #{cdan_loss.1} parent=11 // pred_region
          _
        $region20: #{cdan_loss.1} parent=11 // pred_fallthru
          _
        // Predicated region
        $region21: #{cdan_loss.1} parent=11 // pred_check
          %p169 = pneg %p127
        $region22: #{cdan_loss.1} parent=11 // pred_check_branch
          %171 = sbr.rel (%p169) target = $region24
        $region23: #{cdan_loss.1} parent=11 // pred_region
          _
        $region24: #{cdan_loss.1} parent=11 // pred_fallthru
          _
      $region12: #{cdan_loss.1} parent=5 // pred_fallthru
        _
      %p172 = scmp.lt.s32.totalorder %s12, 2
      // Predicated region
      $region25: #{cdan_loss.1} parent=5 // pred_check
        %p173 = pneg %p172
      $region26: #{cdan_loss.1} parent=5 // pred_check_branch
        %175 = sbr.rel (%p173) target = $region28
      $region27: #{cdan_loss.1} parent=5 // pred_region
        // Predicated region
        $region29: #{cdan_loss.1} parent=27 // pred_check
          %p176 = pneg %p32
        $region30: #{cdan_loss.1} parent=27 // pred_check_branch
          %178 = sbr.rel (%p176) target = $region32
        $region31: #{cdan_loss.1} parent=27 // pred_region
          %s179 = sand.u32 %s22, 1
          %s180 = sand.u32 %s22, 1
          %s181 = smul.addr %s180, 32
          %s182 = scalar_lea.vmem [#allocation4], %s181
          %s183 = smul.u32 4, %s12
          %s184 = smul.addr %s183, 4
          %s185 = scalar_lea.vmem %s0, %s184
          // Predicated region
          $region33: #{cdan_loss.1} parent=31 // pred_check
            _
          $region34: #{cdan_loss.1} parent=31 // pred_check_branch
            %187 = sbr.rel (0) target = $region36
          $region35: #{cdan_loss.1} parent=31 // pred_region
            // Predicated region
            $region37: #{cdan_loss.1} parent=35 // pred_check
              _
            $region38: #{cdan_loss.1} parent=35 // pred_check_branch
              %189 = sbr.rel (0) target = $region40
            $region39: #{cdan_loss.1} parent=35 // pred_region
              loop: start=0, step=1, limit=1
              $region41: #{cdan_loss.1} parent=39 // loop_pre_header
                _
              $region42: #{cdan_loss.1} parent=39 // loop_header
                %s191 = sphi 0, %s195
                %p192 = scmp.ge.s32.totalorder %s191, 1
                %s196 = sphi %s185, %s185
                %s197 = sphi %s182, %s182
              $region43: #{cdan_loss.1} parent=39 // loop_header_branch
                %194 = sbr.rel (%p192) target = $region47
              $region44: #{cdan_loss.1} parent=39 // loop_body
                %v198 = vld [vmem:[%s196] sm:$0xff]
                %199 = vst [vmem:[%s197] sm:$0xff] %v198
                %v200 = vld [vmem:[%s196 + $0x8] sm:$0xff]
                %201 = vst [vmem:[%s197 + $0x8] sm:$0xff] %v200
                %v202 = vld [vmem:[%s196 + $0x20] sm:$0xff]
                %203 = vst [vmem:[%s197 + $0x10] sm:$0xff] %v202
                %v204 = vld [vmem:[%s196 + $0x28] sm:$0xff]
                %205 = vst [vmem:[%s197 + $0x18] sm:$0xff] %v204
              $region45: #{cdan_loss.1} parent=39 // loop_footer
                %s195 = sadd.s32 1, %s191
              $region46: #{cdan_loss.1} parent=39 // loop_footer_branch
                %190 = sbr.rel target = $region42
              $region47: #{cdan_loss.1} parent=39 // loop_exit
                _
            $region40: #{cdan_loss.1} parent=35 // pred_fallthru
              _
            // Predicated region
            $region48: #{cdan_loss.1} parent=35 // pred_check
              _
            $region49: #{cdan_loss.1} parent=35 // pred_check_branch
              %207 = sbr.rel target = $region51
            $region50: #{cdan_loss.1} parent=35 // pred_region
              _
            $region51: #{cdan_loss.1} parent=35 // pred_fallthru
              _
          $region36: #{cdan_loss.1} parent=31 // pred_fallthru
            _
          %208 = vnop
        $region32: #{cdan_loss.1} parent=27 // pred_fallthru
          _
        // Predicated region
        $region52: #{cdan_loss.1} parent=27 // pred_check
          %p209 = pneg %p58
        $region53: #{cdan_loss.1} parent=27 // pred_check_branch
          %211 = sbr.rel (%p209) target = $region55
        $region54: #{cdan_loss.1} parent=27 // pred_region
          %s212 = smul.u32 64, %s12
          %p213 = scmp.lt.s32.totalorder %s212, 127
          %s214 = scalar_select %p213, %s212, 127
          %s215 = smul.addr %s214, 2
          %s216 = smul.addr %s215, 4
          %s217 = scalar_lea.vmem %s1, %s216
          %s218 = smul.u32 64, %s12
        $region55: #{cdan_loss.1} parent=27 // pred_fallthru
          _
      $region28: #{cdan_loss.1} parent=5 // pred_fallthru
        _
      %p219 = scmp.le.s32.totalorder 1, %s12
      %p220 = scmp.lt.s32.totalorder %s12, 3
      %p221 = pnand %p219, %p220
      %p222 = pneg %p221
      // Predicated region
      $region56: #{cdan_loss.1} parent=5 // pred_check
        _
      $region57: #{cdan_loss.1} parent=5 // pred_check_branch
        %224 = sbr.rel (%p221) target = $region59
      $region58: #{cdan_loss.1} parent=5 // pred_region
        %s225 = ssub.s32 %s12, 1
        %s226 = sand.u32 %s25, 1
        %s227 = sand.u32 %s25, 1
        %s228 = smul.addr %s227, 32
        %s229 = scalar_lea.vmem [#allocation4], %s228
        // Predicated region
        $region60: #{cdan_loss.1} parent=58 // pred_check
          %p230 = pneg %p38
        $region61: #{cdan_loss.1} parent=58 // pred_check_branch
          %232 = sbr.rel (%p230) target = $region63
        $region62: #{cdan_loss.1} parent=58 // pred_region
          _
        $region63: #{cdan_loss.1} parent=58 // pred_fallthru
          _
        %s233 = sand.u32 %s25, 1
        %s234 = sand.u32 %s25, 1
        %s235 = smul.addr %s234, 32
        %s236 = scalar_lea.vmem [#allocation4], %s235
        %p237 = pneg %p38
        %p238 = pneg %p35
        %s239 = smul.u32 64, %s17
        %p240 = scmp.lt.s32.totalorder %s239, 127
        %s241 = scalar_select %p240, %s239, 127
        %s242 = smul.addr %s241, 2
        %s243 = smul.addr %s242, 4
        %s244 = scalar_lea.vmem %s1, %s243
        %p245 = pneg %p64
        %p246 = pneg %p61
        %p247 = pneg %p85
        %p248 = pneg %p82
        %p249 = pneg %p106
        %p250 = pneg %p103
        %p251 = pneg %p127
        %p252 = pneg %p124
        %p253 = pneg %p148
        %p254 = pneg %p145
        %s255 = smul.u32 4, %s17
        %s256 = smul.u32 64, %s17
        %p257 = scmp.lt.s32.totalorder %s256, 127
        %s258 = scalar_select %p257, %s256, 127
        %s259 = smul.addr %s258, 2
        %s260 = smul.addr %s259, 4
        %s261 = scalar_lea.vmem %s1, %s260
        %s262 = smul.u32 64, %s17
        %p263 = scmp.eq.s32.totalorder %s17, 0
        // Predicated region
        $region64: #{cdan_loss.1} parent=58 // pred_check
          %p264 = pneg %p263
        $region65: #{cdan_loss.1} parent=58 // pred_check_branch
          %266 = sbr.rel (%p264) target = $region67
        $region66: #{cdan_loss.1} parent=58 // pred_region
          %267 = vst [vmem:[#allocation2] sm:$0xff] 0.0
          %268 = vst [vmem:[#allocation2 + $0x8] sm:$0xff] 0.0
          %269 = vst [vmem:[#allocation2 + $0x10] sm:$0xff] 0.0
          %270 = vst [vmem:[#allocation2 + $0x18] sm:$0xff] 0.0
        $region67: #{cdan_loss.1} parent=58 // pred_fallthru
          _
        %v271 = vld [vmem:[#allocation2] sm:$0xff]
        %v272 = vld [vmem:[#allocation2 + $0x8] sm:$0xff]
        %v273 = vld [vmem:[#allocation2 + $0x10] sm:$0xff]
        %v274 = vld [vmem:[#allocation2 + $0x18] sm:$0xff]
        %v275 = vld [vmem:[%s229] sm:$0xff]
        %v276 = vld [vmem:[%s229 + $0x8] sm:$0xff]
        %v277 = vld [vmem:[%s229 + $0x10] sm:$0xff]
        %v278 = vld [vmem:[%s229 + $0x18] sm:$0xff]
        %v279 = vld [vmem:[%s261] sm:$0xff]
        %v280 = vld [vmem:[%s261 + $0x8] sm:$0xff]
        %v281 = vld [vmem:[%s261 + $0x10] sm:$0xff]
        %v282 = vld [vmem:[%s261 + $0x18] sm:$0xff]
        %v283 = vld [vmem:[%s261 + $0x20] sm:$0xff]
        %v284 = vld [vmem:[%s261 + $0x28] sm:$0xff]
        %v285 = vld [vmem:[%s261 + $0x30] sm:$0xff]
        %v286 = vld [vmem:[%s261 + $0x38] sm:$0xff]
        %v287 = vld [vmem:[%s261 + $0x40] sm:$0xff]
        %v288 = vld [vmem:[%s261 + $0x48] sm:$0xff]
        %v289 = vld [vmem:[%s261 + $0x50] sm:$0xff]
        %v290 = vld [vmem:[%s261 + $0x58] sm:$0xff]
        %v291 = vld [vmem:[%s261 + $0x60] sm:$0xff]
        %v292 = vld [vmem:[%s261 + $0x68] sm:$0xff]
        %v293 = vld [vmem:[%s261 + $0x70] sm:$0xff]
        %v294 = vld [vmem:[%s261 + $0x78] sm:$0xff]
        %v295 = vld [vmem:[%s261 + $0x80] sm:$0xff]
        %v296 = vld [vmem:[%s261 + $0x88] sm:$0xff]
        %v297 = vld [vmem:[%s261 + $0x90] sm:$0xff]
        %v298 = vld [vmem:[%s261 + $0x98] sm:$0xff]
        %v299 = vld [vmem:[%s261 + $0xa0] sm:$0xff]
        %v300 = vld [vmem:[%s261 + $0xa8] sm:$0xff]
        %v301 = vld [vmem:[%s261 + $0xb0] sm:$0xff]
        %v302 = vld [vmem:[%s261 + $0xb8] sm:$0xff]
        %v303 = vld [vmem:[%s261 + $0xc0] sm:$0xff]
        %v304 = vld [vmem:[%s261 + $0xc8] sm:$0xff]
        %v305 = vld [vmem:[%s261 + $0xd0] sm:$0xff]
        %v306 = vld [vmem:[%s261 + $0xd8] sm:$0xff]
        %v307 = vld [vmem:[%s261 + $0xe0] sm:$0xff]
        %v308 = vld [vmem:[%s261 + $0xe8] sm:$0xff]
        %v309 = vld [vmem:[%s261 + $0xf0] sm:$0xff]
        %v310 = vld [vmem:[%s261 + $0xf8] sm:$0xff]
        %v311 = vld [vmem:[%s261 + $0x100] sm:$0xff]
        %v312 = vld [vmem:[%s261 + $0x108] sm:$0xff]
        %v313 = vld [vmem:[%s261 + $0x110] sm:$0xff]
        %v314 = vld [vmem:[%s261 + $0x118] sm:$0xff]
        %v315 = vld [vmem:[%s261 + $0x120] sm:$0xff]
        %v316 = vld [vmem:[%s261 + $0x128] sm:$0xff]
        %v317 = vld [vmem:[%s261 + $0x130] sm:$0xff]
        %v318 = vld [vmem:[%s261 + $0x138] sm:$0xff]
        %v319 = vld [vmem:[%s261 + $0x140] sm:$0xff]
        %v320 = vld [vmem:[%s261 + $0x148] sm:$0xff]
        %v321 = vld [vmem:[%s261 + $0x150] sm:$0xff]
        %v322 = vld [vmem:[%s261 + $0x158] sm:$0xff]
        %v323 = vld [vmem:[%s261 + $0x160] sm:$0xff]
        %v324 = vld [vmem:[%s261 + $0x168] sm:$0xff]
        %v325 = vld [vmem:[%s261 + $0x170] sm:$0xff]
        %v326 = vld [vmem:[%s261 + $0x178] sm:$0xff]
        %v327 = vld [vmem:[%s261 + $0x180] sm:$0xff]
        %v328 = vld [vmem:[%s261 + $0x188] sm:$0xff]
        %v329 = vld [vmem:[%s261 + $0x190] sm:$0xff]
        %v330 = vld [vmem:[%s261 + $0x198] sm:$0xff]
        %v331 = vld [vmem:[%s261 + $0x1a0] sm:$0xff]
        %v332 = vld [vmem:[%s261 + $0x1a8] sm:$0xff]
        %v333 = vld [vmem:[%s261 + $0x1b0] sm:$0xff]
        %v334 = vld [vmem:[%s261 + $0x1b8] sm:$0xff]
        %v335 = vld [vmem:[%s261 + $0x1c0] sm:$0xff]
        %v336 = vld [vmem:[%s261 + $0x1c8] sm:$0xff]
        %v337 = vld [vmem:[%s261 + $0x1d0] sm:$0xff]
        %v338 = vld [vmem:[%s261 + $0x1d8] sm:$0xff]
        %v339 = vld [vmem:[%s261 + $0x1e0] sm:$0xff]
        %v340 = vld [vmem:[%s261 + $0x1e8] sm:$0xff]
        %v341 = vld [vmem:[%s261 + $0x1f0] sm:$0xff]
        %v342 = vld [vmem:[%s261 + $0x1f8] sm:$0xff]
        %v347 = vunpack.c.l.b16 %v275
        %v348 = vunpack.c.h.b16 %v275
        %v349 = vunpack.c.l.b16 %v276
        %v350 = vunpack.c.h.b16 %v276
        %v351 = vunpack.c.l.b16 %v277
        %v352 = vunpack.c.h.b16 %v277
        %v353 = vunpack.c.l.b16 %v278
        %v354 = vunpack.c.h.b16 %v278
        %v355 = vpack.c.b16 %v351, %v347
        %v356 = vpack.c.b16 %v352, %v348
        %v357 = vpack.c.b16 %v353, %v349
        %v358 = vpack.c.b16 %v354, %v350
        %v427 = vunpack.c.l.b16 %v279
        %v428 = vunpack.c.h.b16 %v279
        %v429 = vunpack.c.l.b16 %v280
        %v430 = vunpack.c.h.b16 %v280
        %v431 = vunpack.c.l.b16 %v281
        %v432 = vunpack.c.h.b16 %v281
        %v433 = vunpack.c.l.b16 %v282
        %v434 = vunpack.c.h.b16 %v282
        %v435 = vunpack.c.l.b16 %v283
        %v436 = vunpack.c.h.b16 %v283
        %v437 = vunpack.c.l.b16 %v284
        %v438 = vunpack.c.h.b16 %v284
        %v439 = vunpack.c.l.b16 %v285
        %v440 = vunpack.c.h.b16 %v285
        %v441 = vunpack.c.l.b16 %v286
        %v442 = vunpack.c.h.b16 %v286
        %v443 = vunpack.c.l.b16 %v287
        %v444 = vunpack.c.h.b16 %v287
        %v445 = vunpack.c.l.b16 %v288
        %v446 = vunpack.c.h.b16 %v288
        %v447 = vunpack.c.l.b16 %v289
        %v448 = vunpack.c.h.b16 %v289
        %v449 = vunpack.c.l.b16 %v290
        %v450 = vunpack.c.h.b16 %v290
        %v451 = vunpack.c.l.b16 %v291
        %v452 = vunpack.c.h.b16 %v291
        %v453 = vunpack.c.l.b16 %v292
        %v454 = vunpack.c.h.b16 %v292
        %v455 = vunpack.c.l.b16 %v293
        %v456 = vunpack.c.h.b16 %v293
        %v457 = vunpack.c.l.b16 %v294
        %v458 = vunpack.c.h.b16 %v294
        %v459 = vunpack.c.l.b16 %v295
        %v460 = vunpack.c.h.b16 %v295
        %v461 = vunpack.c.l.b16 %v296
        %v462 = vunpack.c.h.b16 %v296
        %v463 = vunpack.c.l.b16 %v297
        %v464 = vunpack.c.h.b16 %v297
        %v465 = vunpack.c.l.b16 %v298
        %v466 = vunpack.c.h.b16 %v298
        %v467 = vunpack.c.l.b16 %v299
        %v468 = vunpack.c.h.b16 %v299
        %v469 = vunpack.c.l.b16 %v300
        %v470 = vunpack.c.h.b16 %v300
        %v471 = vunpack.c.l.b16 %v301
        %v472 = vunpack.c.h.b16 %v301
        %v473 = vunpack.c.l.b16 %v302
        %v474 = vunpack.c.h.b16 %v302
        %v475 = vunpack.c.l.b16 %v303
        %v476 = vunpack.c.h.b16 %v303
        %v477 = vunpack.c.l.b16 %v304
        %v478 = vunpack.c.h.b16 %v304
        %v479 = vunpack.c.l.b16 %v305
        %v480 = vunpack.c.h.b16 %v305
        %v481 = vunpack.c.l.b16 %v306
        %v482 = vunpack.c.h.b16 %v306
        %v483 = vunpack.c.l.b16 %v307
        %v484 = vunpack.c.h.b16 %v307
        %v485 = vunpack.c.l.b16 %v308
        %v486 = vunpack.c.h.b16 %v308
        %v487 = vunpack.c.l.b16 %v309
        %v488 = vunpack.c.h.b16 %v309
        %v489 = vunpack.c.l.b16 %v310
        %v490 = vunpack.c.h.b16 %v310
        %v491 = vunpack.c.l.b16 %v311
        %v492 = vunpack.c.h.b16 %v311
        %v493 = vunpack.c.l.b16 %v312
        %v494 = vunpack.c.h.b16 %v312
        %v495 = vunpack.c.l.b16 %v313
        %v496 = vunpack.c.h.b16 %v313
        %v497 = vunpack.c.l.b16 %v314
        %v498 = vunpack.c.h.b16 %v314
        %v499 = vunpack.c.l.b16 %v315
        %v500 = vunpack.c.h.b16 %v315
        %v501 = vunpack.c.l.b16 %v316
        %v502 = vunpack.c.h.b16 %v316
        %v503 = vunpack.c.l.b16 %v317
        %v504 = vunpack.c.h.b16 %v317
        %v505 = vunpack.c.l.b16 %v318
        %v506 = vunpack.c.h.b16 %v318
        %v507 = vunpack.c.l.b16 %v319
        %v508 = vunpack.c.h.b16 %v319
        %v509 = vunpack.c.l.b16 %v320
        %v510 = vunpack.c.h.b16 %v320
        %v511 = vunpack.c.l.b16 %v321
        %v512 = vunpack.c.h.b16 %v321
        %v513 = vunpack.c.l.b16 %v322
        %v514 = vunpack.c.h.b16 %v322
        %v515 = vunpack.c.l.b16 %v323
        %v516 = vunpack.c.h.b16 %v323
        %v517 = vunpack.c.l.b16 %v324
        %v518 = vunpack.c.h.b16 %v324
        %v519 = vunpack.c.l.b16 %v325
        %v520 = vunpack.c.h.b16 %v325
        %v521 = vunpack.c.l.b16 %v326
        %v522 = vunpack.c.h.b16 %v326
        %v523 = vunpack.c.l.b16 %v327
        %v524 = vunpack.c.h.b16 %v327
        %v525 = vunpack.c.l.b16 %v328
        %v526 = vunpack.c.h.b16 %v328
        %v527 = vunpack.c.l.b16 %v329
        %v528 = vunpack.c.h.b16 %v329
        %v529 = vunpack.c.l.b16 %v330
        %v530 = vunpack.c.h.b16 %v330
        %v531 = vunpack.c.l.b16 %v331
        %v532 = vunpack.c.h.b16 %v331
        %v533 = vunpack.c.l.b16 %v332
        %v534 = vunpack.c.h.b16 %v332
        %v535 = vunpack.c.l.b16 %v333
        %v536 = vunpack.c.h.b16 %v333
        %v537 = vunpack.c.l.b16 %v334
        %v538 = vunpack.c.h.b16 %v334
        %v539 = vunpack.c.l.b16 %v335
        %v540 = vunpack.c.h.b16 %v335
        %v541 = vunpack.c.l.b16 %v336
        %v542 = vunpack.c.h.b16 %v336
        %v543 = vunpack.c.l.b16 %v337
        %v544 = vunpack.c.h.b16 %v337
        %v545 = vunpack.c.l.b16 %v338
        %v546 = vunpack.c.h.b16 %v338
        %v547 = vunpack.c.l.b16 %v339
        %v548 = vunpack.c.h.b16 %v339
        %v549 = vunpack.c.l.b16 %v340
        %v550 = vunpack.c.h.b16 %v340
        %v551 = vunpack.c.l.b16 %v341
        %v552 = vunpack.c.h.b16 %v341
        %v553 = vunpack.c.l.b16 %v342
        %v554 = vunpack.c.h.b16 %v342
        %v555 = vpack.c.b16 %v429, %v427
        %v556 = vpack.c.b16 %v430, %v428
        %v557 = vpack.c.b16 %v433, %v431
        %v558 = vpack.c.b16 %v434, %v432
        %v559 = vpack.c.b16 %v437, %v435
        %v560 = vpack.c.b16 %v438, %v436
        %v561 = vpack.c.b16 %v441, %v439
        %v562 = vpack.c.b16 %v442, %v440
        %v563 = vpack.c.b16 %v445, %v443
        %v564 = vpack.c.b16 %v446, %v444
        %v565 = vpack.c.b16 %v449, %v447
        %v566 = vpack.c.b16 %v450, %v448
        %v567 = vpack.c.b16 %v453, %v451
        %v568 = vpack.c.b16 %v454, %v452
        %v569 = vpack.c.b16 %v457, %v455
        %v570 = vpack.c.b16 %v458, %v456
        %v571 = vpack.c.b16 %v461, %v459
        %v572 = vpack.c.b16 %v462, %v460
        %v573 = vpack.c.b16 %v465, %v463
        %v574 = vpack.c.b16 %v466, %v464
        %v575 = vpack.c.b16 %v469, %v467
        %v576 = vpack.c.b16 %v470, %v468
        %v577 = vpack.c.b16 %v473, %v471
        %v578 = vpack.c.b16 %v474, %v472
        %v579 = vpack.c.b16 %v477, %v475
        %v580 = vpack.c.b16 %v478, %v476
        %v581 = vpack.c.b16 %v481, %v479
        %v582 = vpack.c.b16 %v482, %v480
        %v583 = vpack.c.b16 %v485, %v483
        %v584 = vpack.c.b16 %v486, %v484
        %v585 = vpack.c.b16 %v489, %v487
        %v586 = vpack.c.b16 %v490, %v488
        %v587 = vpack.c.b16 %v493, %v491
        %v588 = vpack.c.b16 %v494, %v492
        %v589 = vpack.c.b16 %v497, %v495
        %v590 = vpack.c.b16 %v498, %v496
        %v591 = vpack.c.b16 %v501, %v499
        %v592 = vpack.c.b16 %v502, %v500
        %v593 = vpack.c.b16 %v505, %v503
        %v594 = vpack.c.b16 %v506, %v504
        %v595 = vpack.c.b16 %v509, %v507
        %v596 = vpack.c.b16 %v510, %v508
        %v597 = vpack.c.b16 %v513, %v511
        %v598 = vpack.c.b16 %v514, %v512
        %v599 = vpack.c.b16 %v517, %v515
        %v600 = vpack.c.b16 %v518, %v516
        %v601 = vpack.c.b16 %v521, %v519
        %v602 = vpack.c.b16 %v522, %v520
        %v603 = vpack.c.b16 %v525, %v523
        %v604 = vpack.c.b16 %v526, %v524
        %v605 = vpack.c.b16 %v529, %v527
        %v606 = vpack.c.b16 %v530, %v528
        %v607 = vpack.c.b16 %v533, %v531
        %v608 = vpack.c.b16 %v534, %v532
        %v609 = vpack.c.b16 %v537, %v535
        %v610 = vpack.c.b16 %v538, %v536
        %v611 = vpack.c.b16 %v541, %v539
        %v612 = vpack.c.b16 %v542, %v540
        %v613 = vpack.c.b16 %v545, %v543
        %v614 = vpack.c.b16 %v546, %v544
        %v615 = vpack.c.b16 %v549, %v547
        %v616 = vpack.c.b16 %v550, %v548
        %v617 = vpack.c.b16 %v553, %v551
        %v618 = vpack.c.b16 %v554, %v552
        %683 = vmatprep.subr.bf16.mxu0 %v570
        %684 = vmatpush1.bf16.msra.mxu0 %v569
        %685 = vmatprep.subr.bf16.mxu0 %v568
        %686 = vmatpush1.bf16.msra.mxu0 %v567
        %687 = vmatprep.subr.bf16.mxu0 %v566
        %688 = vmatpush1.bf16.msra.mxu0 %v565
        %689 = vmatprep.subr.bf16.mxu0 %v564
        %690 = vmatpush1.bf16.msra.mxu0 %v563
        %691 = vmatprep.subr.bf16.mxu0 %v562
        %692 = vmatpush1.bf16.msra.mxu0 %v561
        %693 = vmatprep.subr.bf16.mxu0 %v560
        %694 = vmatpush1.bf16.msra.mxu0 %v559
        %695 = vmatprep.subr.bf16.mxu0 %v558
        %696 = vmatpush1.bf16.msra.mxu0 %v557
        %697 = vmatprep.subr.bf16.mxu0 %v556
        %698 = vmatpush1.bf16.msra.mxu0 %v555
        %699 = vmatprep.subr.bf16.mxu0 %v586
        %700 = vmatpush2.bf16.msra.mxu0 %v585
        %701 = vmatprep.subr.bf16.mxu0 %v584
        %702 = vmatpush2.bf16.msra.mxu0 %v583
        %703 = vmatprep.subr.bf16.mxu0 %v582
        %704 = vmatpush2.bf16.msra.mxu0 %v581
        %705 = vmatprep.subr.bf16.mxu0 %v580
        %706 = vmatpush2.bf16.msra.mxu0 %v579
        %707 = vmatprep.subr.bf16.mxu0 %v578
        %708 = vmatpush2.bf16.msra.mxu0 %v577
        %709 = vmatprep.subr.bf16.mxu0 %v576
        %710 = vmatpush2.bf16.msra.mxu0 %v575
        %711 = vmatprep.subr.bf16.mxu0 %v574
        %712 = vmatpush2.bf16.msra.mxu0 %v573
        %713 = vmatprep.subr.bf16.mxu0 %v572
        %714 = vmatpush2.bf16.msra.mxu0 %v571
        %715 = vmatprep.mubr.bf16.mxu0 %v356
        %716 = vmatmul.mubr.bf16.gmra.mxu0 %v355
        %v717 = vpop.f32.mrf.mxu0
        %v718 = vadd.f32 0.0, %v717
        %v719 = vpop.f32.mrf.mxu0
        %v720 = vadd.f32 0.0, %v719
        %v721 = vpop.f32.mrf.mxu0
        %v722 = vadd.f32 0.0, %v721
        %v723 = vpop.f32.mrf.mxu0
        %v724 = vadd.f32 0.0, %v723
        %725 = vdwg.mxu0
        %726 = vmatprep.subr.bf16.mxu0 %v602
        %727 = vmatpush1.bf16.msra.mxu0 %v601
        %728 = vmatprep.subr.bf16.mxu0 %v600
        %729 = vmatpush1.bf16.msra.mxu0 %v599
        %730 = vmatprep.subr.bf16.mxu0 %v598
        %731 = vmatpush1.bf16.msra.mxu0 %v597
        %732 = vmatprep.subr.bf16.mxu0 %v596
        %733 = vmatpush1.bf16.msra.mxu0 %v595
        %734 = vmatprep.subr.bf16.mxu0 %v594
        %735 = vmatpush1.bf16.msra.mxu0 %v593
        %736 = vmatprep.subr.bf16.mxu0 %v592
        %737 = vmatpush1.bf16.msra.mxu0 %v591
        %738 = vmatprep.subr.bf16.mxu0 %v590
        %739 = vmatpush1.bf16.msra.mxu0 %v589
        %740 = vmatprep.subr.bf16.mxu0 %v588
        %741 = vmatpush1.bf16.msra.mxu0 %v587
        %742 = vmatprep.subr.bf16.mxu0 %v618
        %743 = vmatpush2.bf16.msra.mxu0 %v617
        %744 = vmatprep.subr.bf16.mxu0 %v616
        %745 = vmatpush2.bf16.msra.mxu0 %v615
        %746 = vmatprep.subr.bf16.mxu0 %v614
        %747 = vmatpush2.bf16.msra.mxu0 %v613
        %748 = vmatprep.subr.bf16.mxu0 %v612
        %749 = vmatpush2.bf16.msra.mxu0 %v611
        %750 = vmatprep.subr.bf16.mxu0 %v610
        %751 = vmatpush2.bf16.msra.mxu0 %v609
        %752 = vmatprep.subr.bf16.mxu0 %v608
        %753 = vmatpush2.bf16.msra.mxu0 %v607
        %754 = vmatprep.subr.bf16.mxu0 %v606
        %755 = vmatpush2.bf16.msra.mxu0 %v605
        %756 = vmatprep.subr.bf16.mxu0 %v604
        %757 = vmatpush2.bf16.msra.mxu0 %v603
        %758 = vmatprep.mubr.bf16.mxu0 %v358
        %759 = vmatmul.mubr.bf16.gmra.mxu0 %v357
        %v760 = vpop.f32.mrf.mxu0
        %v761 = vadd.f32 %v718, %v760
        %v762 = vpop.f32.mrf.mxu0
        %v763 = vadd.f32 %v720, %v762
        %v764 = vpop.f32.mrf.mxu0
        %v765 = vadd.f32 %v722, %v764
        %v766 = vpop.f32.mrf.mxu0
        %v767 = vadd.f32 %v724, %v766
        %768 = vdwg.mxu0
        %v769 = vadd.f32 %v271, %v761
        %v770 = vadd.f32 %v272, %v763
        %v771 = vadd.f32 %v273, %v765
        %v772 = vadd.f32 %v274, %v767
        %773 = vst [vmem:[#allocation2] sm:$0xff] %v769
        %774 = vst [vmem:[#allocation2 + $0x8] sm:$0xff] %v770
        %775 = vst [vmem:[#allocation2 + $0x10] sm:$0xff] %v771
        %776 = vst [vmem:[#allocation2 + $0x18] sm:$0xff] %v772
        %p777 = scmp.eq.s32.totalorder %s17, 1
        // Predicated region
        $region68: #{cdan_loss.1} parent=58 // pred_check
          %p778 = pneg %p777
        $region69: #{cdan_loss.1} parent=58 // pred_check_branch
          %780 = sbr.rel (%p778) target = $region71
        $region70: #{cdan_loss.1} parent=58 // pred_region
          %v781 = vld [vmem:[#allocation2] sm:$0xff]
          %v782 = vld [vmem:[#allocation2 + $0x8] sm:$0xff]
          %v783 = vld [vmem:[#allocation2 + $0x10] sm:$0xff]
          %v784 = vld [vmem:[#allocation2 + $0x18] sm:$0xff]
          %v785 = vld [vmem:[%s2] sm:$0x3]
          %v787 = vlaneseq
          %v788 = vshrl.u32 %v787, 7
          %v789 = vsub.s32 0, %v788
          %v790 = vrot.slane %v785, %v789
          %v791 = vlaneseq
          %v792 = vshrl.u32 %v791, 7
          %v793 = vsub.s32 1, %v792
          %v794 = vrot.slane %v785, %v793
          %v797 = vadd.f32 %v781, %v790
          %v798 = vadd.f32 %v782, %v794
          %v799 = vadd.f32 %v783, %v790
          %v800 = vadd.f32 %v784, %v794
          %v801 = vmax.f32 %v797, 0.0
          %v802 = vmax.f32 %v798, 0.0
          %v803 = vmax.f32 %v799, 0.0
          %v804 = vmax.f32 %v800, 0.0
          %v805 = vld [vmem:[%s3] sm:$0x3]
          %v807 = vlaneseq
          %v808 = vshrl.u32 %v807, 7
          %v809 = vsub.s32 0, %v808
          %v810 = vrot.slane %v805, %v809
          %v811 = vlaneseq
          %v812 = vshrl.u32 %v811, 7
          %v813 = vsub.s32 1, %v812
          %v814 = vrot.slane %v805, %v813
          %v817 = vmul.f32 %v801, %v810
          %v818 = vmul.f32 %v802, %v814
          %v819 = vmul.f32 %v803, %v810
          %v820 = vmul.f32 %v804, %v814
          %v821 = vadd.f32 %v817, %v818
          %822 = vadd.xlane.f32.xlu0 %v821
          %v823 = vpop.xlane.xlu0 %822
          %v824 = vadd.f32 %v819, %v820
          %825 = vadd.xlane.f32.xlu0 %v824
          %v826 = vpop.xlane.xlu0 %825
          %s827 = sld [smem:[#allocation3]]
          %v828 = vstv %s827
          %v829 = vadd.f32 %v823, %v828
          %v830 = vadd.f32 %v826, %v828
          %v831 = vlaneseq
          %v832 = vshrl.u32 %v831, 7
          %v833 = vadd.s32 %v832, 8
          %vm834 = vcmp.lt.s32.totalorder %v832, 8
          %vm835 = vcmp.lt.s32.totalorder %v833, 8
          %v836 = vsel %vm834, 1, 0
          %v837 = vsel %vm835, 1, 0
          %v838 = vcvt.s32.f32 %v836
          %v839 = vcvt.s32.f32 %v837
          %v840 = vmax.f32 %v829, 0.0
          %v841 = vmax.f32 %v830, 0.0
          %v842 = vmul.f32 %v838, %v829
          %v843 = vmul.f32 %v839, %v830
          %v844 = vsub.f32 %v840, %v842
          %v845 = vsub.f32 %v841, %v843
          %v846 = vand.u32 2147483647, %v829
          %v847 = vand.u32 2147483647, %v830
          %v848 = vsub.f32 0.0, %v846
          %v849 = vsub.f32 0.0, %v847
          %v850 = vmul.f32 %v848, 1.442695
          %v851 = vpow.pop %v850
          %v852 = vmul.f32 %v849, 1.442695
          %v853 = vpow.pop %v852
          %v854 = vadd.f32 %v851, 1.0
          %v855 = vlog2.pop %v854
          %v856 = vmul.f32 %v855, 0.6931472
          %v857 = vmul.f32 -0.5, %v851
          %v858 = vadd.f32 %v857, 1.0
          %v859 = vmul.f32 %v858, %v851
          %v860 = vand.u32 2147483647, %v851
          %vm861 = vcmp.lt.f32.partialorder %v860, 0.0004427343
          %v862 = vsel %vm861, %v859, %v856
          %v863 = vadd.f32 %v853, 1.0
          %v864 = vlog2.pop %v863
          %v865 = vmul.f32 %v864, 0.6931472
          %v866 = vmul.f32 -0.5, %v853
          %v867 = vadd.f32 %v866, 1.0
          %v868 = vmul.f32 %v867, %v853
          %v869 = vand.u32 2147483647, %v853
          %vm870 = vcmp.lt.f32.partialorder %v869, 0.0004427343
          %v871 = vsel %vm870, %v868, %v865
          %v872 = vadd.f32 %v844, %v862
          %v873 = vadd.f32 %v845, %v871
          %vm874 = vcmask 7168
          %v875 = vsel %vm874, %v872, 0.0
          %v876 = vsel %vm874, %v873, 0.0
          %v877 = vadd.f32 %v875, %v876
          %878 = vadd.xlane.f32.xlu0 %v877
          %v879 = vpop.xlane.xlu0 %878
          %v880 = vrot.slane %v879, 4
          %v881 = vadd.f32 %v879, %v880
          %v882 = vrot.slane %v881, 2
          %v883 = vadd.f32 %v881, %v882
          %v884 = vrot.slane %v883, 1
          %v885 = vadd.f32 %v883, %v884
          %s886 = vtos %v885
          %v887 = vstv %s886
          %888 = vst [vmem:[%s5] sm:$0x1] %v887
        $region71: #{cdan_loss.1} parent=58 // pred_fallthru
          _
        // Predicated region
        $region72: #{cdan_loss.1} parent=58 // pred_check
          %p889 = pneg %p145
        $region73: #{cdan_loss.1} parent=58 // pred_check_branch
          %891 = sbr.rel (%p889) target = $region75
        $region74: #{cdan_loss.1} parent=58 // pred_region
          _
        $region75: #{cdan_loss.1} parent=58 // pred_fallthru
          _
        // Predicated region
        $region76: #{cdan_loss.1} parent=58 // pred_check
          %p892 = pneg %p145
        $region77: #{cdan_loss.1} parent=58 // pred_check_branch
          %894 = sbr.rel (%p892) target = $region79
        $region78: #{cdan_loss.1} parent=58 // pred_region
          _
        $region79: #{cdan_loss.1} parent=58 // pred_fallthru
          _
      $region59: #{cdan_loss.1} parent=5 // pred_fallthru
        _
      %p895 = scmp.le.s32.totalorder 2, %s12
      // Predicated region
      $region80: #{cdan_loss.1} parent=5 // pred_check
        %p896 = pneg %p895
      $region81: #{cdan_loss.1} parent=5 // pred_check_branch
        %898 = sbr.rel (%p896) target = $region83
      $region82: #{cdan_loss.1} parent=5 // pred_region
        %s899 = ssub.s32 %s12, 2
      $region83: #{cdan_loss.1} parent=5 // pred_fallthru
        _
    $region6: #{cdan_loss.1} parent=1 // loop_footer
      %s16 = sadd.s32 1, %s12
    $region7: #{cdan_loss.1} parent=1 // loop_footer_branch
      %11 = sbr.rel target = $region3
    $region8: #{cdan_loss.1} parent=1 // loop_exit
      _

</llo_original>
